<compile_context>
chip_gen: v7x
topology: tpu7x:2x2x1
jax: 0.10.0
libtpu: 0.0.40
codegen_flags: <defaults>
</compile_context>

<pallas_src>
import jax
import jax.numpy as jnp
from jax.experimental import pallas as pl
from jax.experimental.pallas import tpu as pltpu


def _round_up(x, m):
    return ((x + m - 1) // m) * m


def _vmem_hw_budget_bytes():
    """~75% of per-core VMEM: ~48 MiB on v7x, ~96 MiB on v5e/v6e."""
    try:
        cap = pltpu.get_tpu_info().vmem_capacity_bytes
    except Exception:
        cap = 64 * 1024 * 1024  # conservative (v7x per-TC physical VMEM)
    return int(0.75 * cap)


def _pick_row_tile(M, tm_target):
    """Pick a sublane-aligned row tile; prefer one that divides round_up(M, 8)."""
    m_pad8 = _round_up(M, 8)
    cap = max(8, min(_round_up(tm_target, 8), m_pad8))
    t = cap
    while t >= 8:
        if m_pad8 % t == 0:
            break
        t -= 8
    if t >= min(cap, 128):
        return t, m_pad8          # no padded rows at all
    return cap, _round_up(M, cap)  # accept a little row padding, keep tiles big


def _footprint_bytes(tm, tn, d_pad, x_bytes, w_bytes, o_bytes):
    """Conservative per-step VMEM footprint (double-buffered streams)."""
    x_blk = 2 * tm * (2 * d_pad) * x_bytes
    w_blk = 2 * d_pad * tn * w_bytes
    b_blk = 2 * tn * 4
    o_blk = 2 * tm * tn * o_bytes
    gate = tm * d_pad * w_bytes
    acc = tm * tn * 4
    return x_blk + w_blk + b_blk + o_blk + gate + acc


def _choose_tiling(M, d_pad, e_pad, x_bytes, w_bytes, o_bytes,
                   tm_target, tn_target, budget):
    """Prefer a resident weight (tn == e_pad); otherwise a 128-multiple divisor."""
    tn_candidates = []
    if tn_target is not None:
        tn_candidates.append(min(_round_up(tn_target, 128), e_pad))
    tn_candidates.append(e_pad)
    t = e_pad - 128
    while t >= 128:
        if e_pad % t == 0:
            tn_candidates.append(t)
        t -= 128

    seen = set()
    for tn_eff in tn_candidates:
        if tn_eff in seen:
            continue
        seen.add(tn_eff)
        tm_try = tm_target
        while tm_try >= 8:
            tm_eff, m_pad = _pick_row_tile(M, tm_try)
            if _footprint_bytes(tm_eff, tn_eff, d_pad,
                                x_bytes, w_bytes, o_bytes) <= budget:
                return tm_eff, m_pad, tn_eff
            if tm_eff <= 8:
                break
            tm_try = max(8, tm_try // 2)
    tm_eff, m_pad = _pick_row_tile(M, 8)
    return tm_eff, m_pad, 128


def _xor_proj_resident_kernel(x_ref, w_ref, b_ref, o_ref):
    """Weight-resident path: one grid axis over row tiles, W/bias loaded once.

    x_ref: (TM, 2*Dp)  activation rows (halves at [0,Dp) / [Dp,2Dp))
    w_ref: (Dp, Ep)    -0.25 * W.T, zero-padded, matmul dtype (bf16 by default)
    b_ref: (1,  Ep)    bias + 0.25 * W.sum(axis=1), f32
    o_ref: (TM, Ep)
    """
    dp = w_ref.shape[0]
    t1 = jnp.tanh(0.5 * x_ref[:, :dp].astype(jnp.float32))
    t2 = jnp.tanh(0.5 * x_ref[:, dp:].astype(jnp.float32))
    gate = (t1 * t2).astype(w_ref.dtype)
    acc = jnp.dot(gate, w_ref[...], preferred_element_type=jnp.float32)
    o_ref[...] = (acc + b_ref[...]).astype(o_ref.dtype)


def _xor_proj_tiled_kernel(x_ref, w_ref, b_ref, o_ref, gate_ref):
    """Tiled path: grid (rows, cols); gate computed once per row tile (j == 0),
    cached in VMEM scratch and reused across all output-column tiles."""
    @pl.when(pl.program_id(1) == 0)
    def _():
        dp = gate_ref.shape[1]
        t1 = jnp.tanh(0.5 * x_ref[:, :dp].astype(jnp.float32))
        t2 = jnp.tanh(0.5 * x_ref[:, dp:].astype(jnp.float32))
        gate_ref[...] = (t1 * t2).astype(gate_ref.dtype)

    acc = jnp.dot(gate_ref[...], w_ref[...], preferred_element_type=jnp.float32)
    o_ref[...] = (acc + b_ref[...]).astype(o_ref.dtype)


def make_differentiable_xor_layer(w, bias, *, tm=512, tn=None,
                                  matmul_dtype=jnp.bfloat16,
                                  vmem_budget_bytes=None):
    """Build the layer from PyTorch-layout params.

    w:    (E, E//2)  nn.Linear(E//2, E) weight
    bias: (E,)       nn.Linear bias
    matmul_dtype: MXU operand dtype (bf16 default; pass jnp.float32 for strict parity)
    Returns apply(x) for x of shape (..., E).
    """
    E, d = w.shape
    assert E == 2 * d, "Embedding dimension must be even for the XOR module."

    d_pad = _round_up(d, 128)   # lane-aligned K
    e_pad = _round_up(E, 128)   # lane-aligned N

    # One-time param prep (exact algebra, see header): fold -0.25 into W,
    # fold the constant 0.25 * W.sum into the bias. Padded K rows are zero.
    w32 = w.astype(jnp.float32)
    w_prep = jnp.pad((-0.25 * w32).T,
                     ((0, d_pad - d), (0, e_pad - E))).astype(matmul_dtype)
    b_prep = bias.astype(jnp.float32) + 0.25 * w32.sum(axis=1)
    b_prep = jnp.pad(b_prep, (0, e_pad - E)).reshape(1, e_pad)

    hw_budget = _vmem_hw_budget_bytes()
    tiling_budget = vmem_budget_bytes if vmem_budget_bytes is not None else hw_budget
    w_bytes = jnp.dtype(matmul_dtype).itemsize

    def apply(x):
        lead = x.shape[:-1]
        assert x.shape[-1] == E
        M = 1
        for s in lead:
            M *= s
        x_bytes = jnp.dtype(x.dtype).itemsize

        tm_eff, m_pad, tn_eff = _choose_tiling(
            M, d_pad, e_pad, x_bytes, w_bytes, x_bytes, tm, tn, tiling_budget)

        # Activation layout: halves land at columns [0, d_pad) and [d_pad, 2*d_pad).
        if d == d_pad:
            # Fast path: no repack; halves are already lane-aligned in x.
            x_in = x.reshape(M, E)
            if m_pad != M:
                x_in = jnp.pad(x_in, ((0, m_pad - M), (0, 0)))
        else:
            x3 = x.reshape(M, 2, d)
            x_in = jnp.pad(
                x3, ((0, m_pad - M), (0, 0), (0, d_pad - d))
            ).reshape(m_pad, 2 * d_pad)

        if tn_eff == e_pad:
            # Weight-resident path: W/bias index_map is constant -> DMA'd once.
            grid = (m_pad // tm_eff,)
            out = pl.pallas_call(
                _xor_proj_resident_kernel,
                out_shape=jax.ShapeDtypeStruct((m_pad, e_pad), x.dtype),
                grid_spec=pltpu.PrefetchScalarGridSpec(
                    num_scalar_prefetch=0,
                    grid=grid,
                    in_specs=[
                        pl.BlockSpec((tm_eff, 2 * d_pad), lambda i: (i, 0)),
                        pl.BlockSpec((d_pad, e_pad), lambda i: (0, 0)),
                        pl.BlockSpec((1, e_pad), lambda i: (0, 0)),
                    ],
                    out_specs=pl.BlockSpec((tm_eff, e_pad), lambda i: (i, 0)),
                ),
                compiler_params=pltpu.CompilerParams(
                    dimension_semantics=("parallel",),
                    vmem_limit_bytes=hw_budget,
                ),
            )(x_in, w_prep, b_prep)
        else:
            # Tiled path: gate cached per row tile, cols revisited ("arbitrary").
            grid = (m_pad // tm_eff, e_pad // tn_eff)
            out = pl.pallas_call(
                _xor_proj_tiled_kernel,
                out_shape=jax.ShapeDtypeStruct((m_pad, e_pad), x.dtype),
                grid_spec=pltpu.PrefetchScalarGridSpec(
                    num_scalar_prefetch=0,
                    grid=grid,
                    in_specs=[
                        pl.BlockSpec((tm_eff, 2 * d_pad), lambda i, j: (i, 0)),
                        pl.BlockSpec((d_pad, tn_eff), lambda i, j: (0, j)),
                        pl.BlockSpec((1, tn_eff), lambda i, j: (0, j)),
                    ],
                    out_specs=pl.BlockSpec((tm_eff, tn_eff), lambda i, j: (i, j)),
                    scratch_shapes=[pltpu.VMEM((tm_eff, d_pad), matmul_dtype)],
                ),
                compiler_params=pltpu.CompilerParams(
                    dimension_semantics=("parallel", "arbitrary"),
                    vmem_limit_bytes=hw_budget,
                ),
            )(x_in, w_prep, b_prep)

        return out[:M, :E].reshape(*lead, E)

    return apply


def reference(x, w, bias):
    d = x.shape[-1] // 2
    a = jax.nn.sigmoid(x[..., :d])
    b = jax.nn.sigmoid(x[..., d:])
    xor_out = 0.5 * (a + b - 2.0 * a * b)
    return xor_out @ w.T + bias


if __name__ == "__main__":
    key = jax.random.PRNGKey(0)
    k_x, k_w, k_b, k_x2, k_w2, k_b2 = jax.random.split(key, 6)

    # ---- Test 1: small module shape; resident-W path, bf16 MXU (default). ----
    batch, seq, embed_dim = 2, 8, 32
    d = embed_dim // 2
    x = jax.random.normal(k_x, (batch, seq, embed_dim), dtype=jnp.float32)
    bound = 1.0 / (d ** 0.5)
    w = jax.random.uniform(k_w, (embed_dim, d), jnp.float32, -bound, bound)
    bias = jax.random.uniform(k_b, (embed_dim,), jnp.float32, -bound, bound)

    out_bf16 = jax.block_until_ready(make_differentiable_xor_layer(w, bias)(x))
    ref = reference(x, w, bias)
    assert out_bf16.shape == (batch, seq, embed_dim)
    assert jnp.allclose(out_bf16, ref, atol=2e-2, rtol=2e-2)

    # Strict-parity f32 MXU path.
    out_f32 = jax.block_until_ready(
        make_differentiable_xor_layer(w, bias, matmul_dtype=jnp.float32)(x))
    assert jnp.allclose(out_f32, ref, atol=1e-4, rtol=1e-4)

    # ---- Test 2: 128-aligned d (no-repack fast path) + forced tiny VMEM budget
    # so the tiled (gate-cached, column-revisiting) kernel path is exercised. ----
    embed_dim2 = 256
    d2 = embed_dim2 // 2
    x2 = jax.random.normal(k_x2, (batch, seq, embed_dim2), dtype=jnp.float32)
    bound2 = 1.0 / (d2 ** 0.5)
    w2 = jax.random.uniform(k_w2, (embed_dim2, d2), jnp.float32, -bound2, bound2)
    bias2 = jax.random.uniform(k_b2, (embed_dim2,), jnp.float32, -bound2, bound2)

    layer2 = make_differentiable_xor_layer(w2, bias2, vmem_budget_bytes=150 * 1024)
    out2 = jax.block_until_ready(layer2(x2))
    ref2 = reference(x2, w2, bias2)
    assert out2.shape == (batch, seq, embed_dim2)
    assert jnp.allclose(out2, ref2, atol=2e-2, rtol=2e-2)

    print("KERNEL_OK")
</pallas_src>

<mosaic_0001>
module attributes {stable_mosaic.version = 11 : i64} {
  func.func @_xor_proj_resident_kernel(%arg0: i32, %arg1: memref<16x256xf32, #tpu.memory_space<vmem>>, %arg2: memref<128x128xbf16, #tpu.memory_space<vmem>>, %arg3: memref<1x128xf32, #tpu.memory_space<vmem>>, %arg4: memref<16x128xf32, #tpu.memory_space<vmem>>) attributes {dimension_semantics = [#tpu.dimension_semantics<parallel>], iteration_bounds = array<i64: 1>, scalar_prefetch = 0 : i64, scratch_operands = 0 : i64, tpu.core_type = #tpu.core_type<tc>, window_params = [{transform_indices = @transform_0, window_bounds = array<i64: 16, 256>}, {pipeline_mode = #tpu.pipeline_mode<synchronous>, transform_indices = @transform_1, window_bounds = array<i64: 128, 128>}, {pipeline_mode = #tpu.pipeline_mode<synchronous>, transform_indices = @transform_2, window_bounds = array<i64: 1, 128>}, {transform_indices = @transform_3, window_bounds = array<i64: 16, 128>}]} {
    %c0 = arith.constant 0 : index
    %c0_0 = arith.constant 0 : index
    %0 = vector.load %arg1[%c0, %c0_0] : memref<16x256xf32, #tpu.memory_space<vmem>>, vector<16x128xf32>
    %cst = arith.constant 5.000000e-01 : f32
    %1 = vector.broadcast %cst : f32 to vector<16x128xf32>
    %2 = arith.mulf %1, %0 : vector<16x128xf32>
    %3 = math.tanh %2 : vector<16x128xf32>
    %c0_1 = arith.constant 0 : index
    %c128 = arith.constant 128 : index
    %4 = vector.load %arg1[%c0_1, %c128] : memref<16x256xf32, #tpu.memory_space<vmem>>, vector<16x128xf32>
    %cst_2 = arith.constant 5.000000e-01 : f32
    %5 = vector.broadcast %cst_2 : f32 to vector<16x128xf32>
    %6 = arith.mulf %5, %4 : vector<16x128xf32>
    %7 = math.tanh %6 : vector<16x128xf32>
    %8 = arith.mulf %3, %7 : vector<16x128xf32>
    %9 = arith.truncf %8 : vector<16x128xf32> to vector<16x128xbf16>
    %c0_3 = arith.constant 0 : index
    %c0_4 = arith.constant 0 : index
    %10 = vector.load %arg2[%c0_3, %c0_4] : memref<128x128xbf16, #tpu.memory_space<vmem>>, vector<128x128xbf16>
    %cst_5 = arith.constant dense<0.000000e+00> : vector<16x128xf32>
    %11 = tpu.matmul %9, %10, %cst_5 {dimension_numbers = #tpu.dot_dimension_numbers<[1], [0], [0], [1], [0, 0, 1, 1], [], []>} : vector<16x128xbf16>, vector<128x128xbf16>, vector<16x128xf32> -> vector<16x128xf32>
    %c0_6 = arith.constant 0 : index
    %c0_7 = arith.constant 0 : index
    %12 = vector.load %arg3[%c0_6, %c0_7] : memref<1x128xf32, #tpu.memory_space<vmem>>, vector<1x128xf32>
    %13 = vector.broadcast %12 : vector<1x128xf32> to vector<16x128xf32>
    %14 = arith.addf %11, %13 : vector<16x128xf32>
    %c0_8 = arith.constant 0 : index
    %c0_9 = arith.constant 0 : index
    %15 = vector.load %arg4[%c0_8, %c0_9] : memref<16x128xf32, #tpu.memory_space<vmem>>, vector<16x128xf32>
    tpu.vector_store %arg4[%c0_8, %c0_9], %14 {strides = array<i32>} : memref<16x128xf32, #tpu.memory_space<vmem>>, vector<16x128xf32>,
    return
  }
  func.func @transform_0(%arg0: i32) -> (i32, i32) {
    %c0_i32 = arith.constant 0 : i32
    %c0_i32_0 = arith.constant 0 : i32
    return %arg0, %c0_i32 : i32, i32
  }
  func.func @transform_1(%arg0: i32) -> (i32, i32) {
    %c0_i32 = arith.constant 0 : i32
    %c0_i32_0 = arith.constant 0 : i32
    %c0_i32_1 = arith.constant 0 : i32
    return %c0_i32, %c0_i32_0 : i32, i32
  }
  func.func @transform_2(%arg0: i32) -> (i32, i32) {
    %c0_i32 = arith.constant 0 : i32
    %c0_i32_0 = arith.constant 0 : i32
    %c0_i32_1 = arith.constant 0 : i32
    return %c0_i32, %c0_i32_0 : i32, i32
  }
  func.func @transform_3(%arg0: i32) -> (i32, i32) {
    %c0_i32 = arith.constant 0 : i32
    %c0_i32_0 = arith.constant 0 : i32
    return %arg0, %c0_i32 : i32, i32
  }
}

</mosaic_0001>

<llo_original>
// kernel: tpu_custom_call.1
$region0: #{tpu_custom_call.1}
  #allocation0 [shape = 'u32[]', space=smem, size = 0x4, offset = 0x4, fixed_abs, tag = 'smem constant byte address 0x4 - core index']
  #allocation1 [shape = 'u32[144,128]{1,0:T(1,128)}', space=vmem, size = 0x12000, scoped, tag = 'internal scratch']
  %s0 = inlined_call_operand.hbm [shape: f32[16,256], index: 0, kind: input, shape index: {}]
  %s1 = inlined_call_operand.hbm [shape: bf16[128,128], index: 1, kind: input, shape index: {}]
  %s2 = inlined_call_operand.vmem [shape: f32[1,128], index: 2, kind: input, shape index: {}]
  %s3 = inlined_call_operand.hbm [shape: f32[16,128], index: 3, kind: output, shape index: {}]
  %s4 = sld [smem:[#allocation0]]
  $region30: #{tpu_custom_call.1} parent=0
    _
  %s6 = ssub.s32 1, %s4
  %s7 = scalar_select 0, %s6, %s4
  $region1: #{tpu_custom_call.1} parent=0
    #allocation2 [shape = 'u8[16384]{0}', space=vmem, size = 0x4000, scoped, tag = 'input window, operand 0, single buffered']
    #allocation3 [shape = 's32[1]{0}', space=sflag, size = 0x4, scoped, tag = 'scoped memory for tpu_custom_call.1']
    #allocation4 [shape = 's32[1]{0}', space=sflag, size = 0x4, scoped, tag = 'scoped memory for tpu_custom_call.1']
    #allocation5 [shape = 'u8[32768]{0}', space=vmem, size = 0x8000, scoped, tag = 'input window, operand 1, single buffered']
    #allocation6 [shape = 's32[1]{0}', space=sflag, size = 0x4, scoped, tag = 'scoped memory for tpu_custom_call.1']
    #allocation7 [shape = 'u8[8192]{0}', space=vmem, size = 0x2000, scoped, tag = 'output window, operand 0, single buffered']
    %8 = vsyncpa [#allocation3], 0
    %9 = vsyncpa [#allocation6], 0
    %10 = vsyncpa [#allocation4], 0
    // Predicated region
    $region2: #{tpu_custom_call.1} parent=1 // pred_check
      _
    $region3: #{tpu_custom_call.1} parent=1 // pred_check_branch
      %12 = sbr.rel (0) target = $region5
    $region4: #{tpu_custom_call.1} parent=1 // pred_region
      %s14 = ssub.s32 512, 512
      %15 = vsyncadd [#allocation3], %s14
      %s16 = sshll.u32 [#allocation2], 4
      %s17 = int_to_ptr.vmem [resolvable:$true] %s16
      %22 = dma.hbm_to_vmem [thread:$0]  %s0, 512, %s17, [#allocation3], 256, 256, 16
    $region5: #{tpu_custom_call.1} parent=1 // pred_fallthru
      _
    // Predicated region
    $region6: #{tpu_custom_call.1} parent=1 // pred_check
      _
    $region7: #{tpu_custom_call.1} parent=1 // pred_check_branch
      %24 = sbr.rel (0) target = $region9
    $region8: #{tpu_custom_call.1} parent=1 // pred_region
      %s26 = ssub.s32 1024, 1024
      %27 = vsyncadd [#allocation6], %s26
      %s28 = sshll.u32 [#allocation5], 4
      %s29 = int_to_ptr.vmem [resolvable:$true] %s28
      %34 = dma.hbm_to_vmem [thread:$0]  %s1, 1024, %s29, [#allocation6], 64, 64, 4
    $region9: #{tpu_custom_call.1} parent=1 // pred_fallthru
      _
    // Predicated region
    $region10: #{tpu_custom_call.1} parent=1 // pred_check
      _
    $region11: #{tpu_custom_call.1} parent=1 // pred_check_branch
      %36 = sbr.rel (0) target = $region13
    $region12: #{tpu_custom_call.1} parent=1 // pred_region
      _
    $region13: #{tpu_custom_call.1} parent=1 // pred_fallthru
      _
    // Predicated region
    $region14: #{tpu_custom_call.1} parent=1 // pred_check
      _
    $region15: #{tpu_custom_call.1} parent=1 // pred_check_branch
      %38 = sbr.rel (0) target = $region17
    $region16: #{tpu_custom_call.1} parent=1 // pred_region
      %39 = dma.done [#allocation3], 512
    $region17: #{tpu_custom_call.1} parent=1 // pred_fallthru
      _
    // Predicated region
    $region18: #{tpu_custom_call.1} parent=1 // pred_check
      _
    $region19: #{tpu_custom_call.1} parent=1 // pred_check_branch
      %41 = sbr.rel (0) target = $region21
    $region20: #{tpu_custom_call.1} parent=1 // pred_region
      %42 = dma.done [#allocation6], 1024
    $region21: #{tpu_custom_call.1} parent=1 // pred_fallthru
      _
    %v44 = vld [vmem:[#allocation2] sm:$0xff]
    %v45 = vld [vmem:[#allocation2 + $0x10] sm:$0xff]
    %v46 = vmul.f32 %v44, 0.5
    %v47 = vmul.f32 %v45, 0.5
    %v48 = vtanh.pop %v46
    %v49 = vtanh.pop %v47
    %v50 = vld [vmem:[#allocation2 + $0x8] sm:$0xff]
    %v51 = vld [vmem:[#allocation2 + $0x18] sm:$0xff]
    %v52 = vmul.f32 %v50, 0.5
    %v53 = vmul.f32 %v51, 0.5
    %v54 = vtanh.pop %v52
    %v55 = vtanh.pop %v53
    %v56 = vmul.f32 %v48, %v54
    %v57 = vmul.f32 %v49, %v55
    %v58 = vpack.c.bf16 %v57, %v56
    %v59 = vld [vmem:[#allocation5] sm:$0xf]
    %v60 = vld [vmem:[#allocation5 + $0x4] sm:$0xf]
    %v61 = vld [vmem:[#allocation5 + $0x8] sm:$0xf]
    %v62 = vld [vmem:[#allocation5 + $0xc] sm:$0xf]
    %v63 = vld [vmem:[#allocation5 + $0x10] sm:$0xf]
    %v64 = vld [vmem:[#allocation5 + $0x14] sm:$0xf]
    %v65 = vld [vmem:[#allocation5 + $0x18] sm:$0xf]
    %v66 = vld [vmem:[#allocation5 + $0x1c] sm:$0xf]
    %v67 = vld [vmem:[#allocation5 + $0x20] sm:$0xf]
    %v68 = vld [vmem:[#allocation5 + $0x24] sm:$0xf]
    %v69 = vld [vmem:[#allocation5 + $0x28] sm:$0xf]
    %v70 = vld [vmem:[#allocation5 + $0x2c] sm:$0xf]
    %v71 = vld [vmem:[#allocation5 + $0x30] sm:$0xf]
    %v72 = vld [vmem:[#allocation5 + $0x34] sm:$0xf]
    %v73 = vld [vmem:[#allocation5 + $0x38] sm:$0xf]
    %v74 = vld [vmem:[#allocation5 + $0x3c] sm:$0xf]
    %v75 = vld [vmem:[%s2] sm:$0x1]
    %v77 = vlaneseq
    %v78 = vshrl.u32 %v77, 7
    %v79 = vsub.s32 0, %v78
    %v80 = vrot.slane %v75, %v79
    %v98 = vunpack.c.l.b16 %v59
    %v99 = vunpack.c.l.b16 %v60
    %v100 = vunpack.c.l.b16 %v61
    %v101 = vunpack.c.l.b16 %v62
    %v102 = vunpack.c.l.b16 %v63
    %v103 = vunpack.c.l.b16 %v64
    %v104 = vunpack.c.l.b16 %v65
    %v105 = vunpack.c.l.b16 %v66
    %v106 = vunpack.c.l.b16 %v67
    %v107 = vunpack.c.l.b16 %v68
    %v108 = vunpack.c.l.b16 %v69
    %v109 = vunpack.c.l.b16 %v70
    %v110 = vunpack.c.l.b16 %v71
    %v111 = vunpack.c.l.b16 %v72
    %v112 = vunpack.c.l.b16 %v73
    %v113 = vunpack.c.l.b16 %v74
    %v114 = vpack.c.b16 %v99, %v98
    %v115 = vpack.c.b16 %v101, %v100
    %v116 = vpack.c.b16 %v103, %v102
    %v117 = vpack.c.b16 %v105, %v104
    %v118 = vpack.c.b16 %v107, %v106
    %v119 = vpack.c.b16 %v109, %v108
    %v120 = vpack.c.b16 %v111, %v110
    %v121 = vpack.c.b16 %v113, %v112
    %130 = vmatprep.subr.bf16.mxu0 0
    %131 = vmatpush1.bf16.msra.mxu0 %v114
    %132 = vmatprep.subr.bf16.mxu0 0
    %133 = vmatpush1.bf16.msra.mxu0 %v115
    %134 = vmatprep.subr.bf16.mxu0 0
    %135 = vmatpush1.bf16.msra.mxu0 %v116
    %136 = vmatprep.subr.bf16.mxu0 0
    %137 = vmatpush1.bf16.msra.mxu0 %v117
    %138 = vmatprep.subr.bf16.mxu0 0
    %139 = vmatpush1.bf16.msra.mxu0 %v118
    %140 = vmatprep.subr.bf16.mxu0 0
    %141 = vmatpush1.bf16.msra.mxu0 %v119
    %142 = vmatprep.subr.bf16.mxu0 0
    %143 = vmatpush1.bf16.msra.mxu0 %v120
    %144 = vmatprep.subr.bf16.mxu0 0
    %145 = vmatpush1.bf16.msra.mxu0 %v121
    %146 = vmatprep.subr.bf16.mxu0 0
    %147 = vmatpush1.bf16.msra.mxu0 0
    %148 = vmatprep.subr.bf16.mxu0 0
    %149 = vmatpush1.bf16.msra.mxu0 0
    %150 = vmatprep.subr.bf16.mxu0 0
    %151 = vmatpush1.bf16.msra.mxu0 0
    %152 = vmatprep.subr.bf16.mxu0 0
    %153 = vmatpush1.bf16.msra.mxu0 0
    %154 = vmatprep.subr.bf16.mxu0 0
    %155 = vmatpush1.bf16.msra.mxu0 0
    %156 = vmatprep.subr.bf16.mxu0 0
    %157 = vmatpush1.bf16.msra.mxu0 0
    %158 = vmatprep.subr.bf16.mxu0 0
    %159 = vmatpush1.bf16.msra.mxu0 0
    %160 = vmatprep.subr.bf16.mxu0 0
    %161 = vmatpush1.bf16.msra.mxu0 0
    %162 = vmatprep.mubr.bf16.mxu0 0
    %163 = vmatmul.mubr.bf16.gmra.mrb[0].mxu0 %v58
    %v164 = vpop.f32.mrb[0].mxu0
    %v165 = vadd.f32 %v80, %v164
    %v166 = vpop.f32.mrb[0].mxu0
    %v167 = vpop.f32.mrb[0].mxu0
    %v168 = vadd.f32 %v80, %v167
    %v169 = vpop.f32.mrb[0].mxu0
    %170 = vdwg.mxu0
    %171 = vst [vmem:[#allocation7] sm:$0xff] %v165
    %172 = vst [vmem:[#allocation7 + $0x8] sm:$0xff] %v168
    // Predicated region
    $region22: #{tpu_custom_call.1} parent=1 // pred_check
      _
    $region23: #{tpu_custom_call.1} parent=1 // pred_check_branch
      %174 = sbr.rel (0) target = $region25
    $region24: #{tpu_custom_call.1} parent=1 // pred_region
      %s176 = ssub.s32 256, 256
      %177 = vsyncadd [#allocation4], %s176
      %s178 = sshll.u32 [#allocation7], 4
      %s179 = int_to_ptr.vmem [resolvable:$true] %s178
      %184 = dma.vmem_to_hbm [thread:$0]  %s179, 256, %s3, [#allocation4], 128, 128, 8
    $region25: #{tpu_custom_call.1} parent=1 // pred_fallthru
      _
    // Predicated region
    $region26: #{tpu_custom_call.1} parent=1 // pred_check
      _
    $region27: #{tpu_custom_call.1} parent=1 // pred_check_branch
      %186 = sbr.rel (0) target = $region29
    $region28: #{tpu_custom_call.1} parent=1 // pred_region
      %187 = dma.done [#allocation4], 256
    $region29: #{tpu_custom_call.1} parent=1 // pred_fallthru
      _
    %188 = vsyncpa [#allocation3], 1
    %189 = vsyncpa [#allocation6], 1
    %190 = vsyncpa [#allocation4], 1

</llo_original>
